<compile_context>
chip_gen: v5e
topology: v5e:2x2
jax: 0.10.0
libtpu: 0.0.40
codegen_flags: <defaults>
</compile_context>

<pallas_src>
import functools

import jax
import jax.numpy as jnp
from jax import lax
from jax.experimental import pallas as pl
from jax.experimental.pallas import tpu as pltpu


_LANE = 128
_MAX_BLOCK_BYTES = 16 * 1024 * 1024    # per input block; double-buffered ~32 MiB
_VMEM_LIMIT_BYTES = 48 * 1024 * 1024   # safe on v5e/v6e (128 MiB) and v7x (64 MiB)


def _sublane(dtype):
    # Sublane packing: 8 rows for 4-byte, 16 for 2-byte, 32 for 1-byte dtypes.
    return {4: 8, 2: 16, 1: 32}.get(jnp.dtype(dtype).itemsize, 8)


def _round_up(n, m):
    return -(-n // m) * m


def _lowest(dtype):
    dtype = jnp.dtype(dtype)
    if jnp.issubdtype(dtype, jnp.floating):
        return float("-inf")
    if dtype == jnp.bool_:
        return False
    return jnp.iinfo(dtype).min


def _rowmax_kernel_1d(x_ref, o_ref):
    # Full spatial rows in one block: a single row-reduce per block.  Mosaic
    # folds the many lane-groups with elementwise VPU max and finishes with one
    # cross-lane (XLU) reduce per 8-row strip.
    o_ref[...] = jnp.max(x_ref[...], axis=1, keepdims=True)


def _rowmax_kernel_2d(x_ref, o_ref, *, total_s, tile_s, ragged, fill):
    # Spatial axis tiled (huge H*W): output block is the running max.
    j = pl.program_id(1)
    x = x_ref[...]
    if ragged:
        # Mask padding columns of the last (partial) spatial block.
        col = j * tile_s + lax.broadcasted_iota(jnp.int32, x.shape, 1)
        x = jnp.where(col < total_s, x, jnp.asarray(fill, dtype=x.dtype))
    blk_max = jnp.max(x, axis=1, keepdims=True)

    @pl.when(j == 0)
    def _():
        # Write the first block's max directly: no -inf fill, int-safe.
        o_ref[...] = blk_max

    @pl.when(j > 0)
    def _():
        o_ref[...] = jnp.maximum(o_ref[...], blk_max)


def spatial_pool2d_pallas(x):
    """Global spatial max pool: (B, C, H, W) -> (B, C, 1, 1)."""
    B, C, H, W = x.shape
    R, S = B * C, H * W
    dtype = x.dtype
    itemsize = jnp.dtype(dtype).itemsize
    sub = _sublane(dtype)

    x2 = x.reshape(R, S)  # NCHW-contiguous -> free reshape, no transpose

    cost = pl.CostEstimate(
        flops=R * S,
        bytes_accessed=(R * S + R) * itemsize,
        transcendentals=0,
    )

    row_bytes = S * itemsize
    if sub * row_bytes <= _MAX_BLOCK_BYTES:
        # ---- Primary path: full spatial rows, 1-D all-parallel grid --------
        max_rows = max(sub, (_MAX_BLOCK_BYTES // row_bytes) // sub * sub)
        tile_r = min(max_rows, _round_up(R, sub))
        if R >= 2 * sub:
            # Guarantee >= 2 row blocks so v7x's second TensorCore participates.
            tile_r = min(tile_r, _round_up((R + 1) // 2, sub))
        grid = (pl.cdiv(R, tile_r),)

        out = pl.pallas_call(
            _rowmax_kernel_1d,
            out_shape=jax.ShapeDtypeStruct((R, 1), dtype),
            grid_spec=pltpu.PrefetchScalarGridSpec(
                num_scalar_prefetch=0,
                grid=grid,
                in_specs=[pl.BlockSpec((tile_r, S), lambda i: (i, 0))],
                out_specs=pl.BlockSpec((tile_r, 1), lambda i: (i, 0)),
            ),
            compiler_params=pltpu.CompilerParams(
                dimension_semantics=("parallel",),
                vmem_limit_bytes=_VMEM_LIMIT_BYTES,
            ),
            cost_estimate=cost,
        )(x2)
    else:
        # ---- Fallback: gigantic H*W — tile the spatial (reduction) axis ----
        tile_r = sub
        tile_s = max(_LANE,
                     (_MAX_BLOCK_BYTES // (tile_r * itemsize)) // _LANE * _LANE)
        tile_s = min(tile_s, _round_up(S, _LANE))
        ragged = (S % tile_s) != 0
        kernel = functools.partial(
            _rowmax_kernel_2d,
            total_s=S, tile_s=tile_s, ragged=ragged, fill=_lowest(dtype))
        grid = (pl.cdiv(R, tile_r), pl.cdiv(S, tile_s))

        out = pl.pallas_call(
            kernel,
            out_shape=jax.ShapeDtypeStruct((R, 1), dtype),
            grid_spec=pltpu.PrefetchScalarGridSpec(
                num_scalar_prefetch=0,
                grid=grid,
                in_specs=[pl.BlockSpec((tile_r, tile_s), lambda i, j: (i, j))],
                out_specs=pl.BlockSpec((tile_r, 1), lambda i, j: (i, 0)),
            ),
            compiler_params=pltpu.CompilerParams(
                dimension_semantics=("parallel", "arbitrary"),
                vmem_limit_bytes=_VMEM_LIMIT_BYTES,
            ),
            cost_estimate=cost,
        )(x2)

    return out.reshape(B, C, 1, 1)


if __name__ == "__main__":
    # Small shapes consistent with the module: batch=2, channels=4, spatial=16.
    B, C, H, W = 2, 4, 16, 16
    key = jax.random.PRNGKey(0)
    x = jax.random.normal(key, (B, C, H, W), dtype=jnp.float32)

    y = spatial_pool2d_pallas(x)
    jax.block_until_ready(y)

    # Pure-JAX reference mirroring the PyTorch forward (per-(b,c) spatial max).
    y_ref = jnp.max(x, axis=(2, 3), keepdims=True)
    assert y.shape == (B, C, 1, 1)
    assert jnp.allclose(y, y_ref, atol=1e-6, rtol=0.0)

    print("KERNEL_OK")
</pallas_src>

<mosaic_0001>
module attributes {stable_mosaic.version = 11 : i64} {
  func.func @_rowmax_kernel_1d(%arg0: i32, %arg1: memref<8x256xf32, #tpu.memory_space<vmem>>, %arg2: memref<8x1xf32, #tpu.memory_space<vmem>>) attributes {dimension_semantics = [#tpu.dimension_semantics<parallel>], iteration_bounds = array<i64: 1>, scalar_prefetch = 0 : i64, scratch_operands = 0 : i64, tpu.core_type = #tpu.core_type<tc>, window_params = [{transform_indices = @transform_0, window_bounds = array<i64: 8, 256>}, {transform_indices = @transform_1, window_bounds = array<i64: 8, 1>}]} {
    %c0 = arith.constant 0 : index
    %c0_0 = arith.constant 0 : index
    %0 = vector.load %arg1[%c0, %c0_0] : memref<8x256xf32, #tpu.memory_space<vmem>>, vector<8x256xf32>
    %cst = arith.constant dense<0xFF800000> : vector<8xf32>
    %1 = vector.multi_reduction <maximumf>, %0, %cst [1] : vector<8x256xf32> to vector<8xf32>
    %2 = vector.shape_cast %1 : vector<8xf32> to vector<8x1xf32>
    %c0_1 = arith.constant 0 : index
    %c0_2 = arith.constant 0 : index
    %3 = vector.load %arg2[%c0_1, %c0_2] : memref<8x1xf32, #tpu.memory_space<vmem>>, vector<8x1xf32>
    tpu.vector_store %arg2[%c0_1, %c0_2], %2 {strides = array<i32>} : memref<8x1xf32, #tpu.memory_space<vmem>>, vector<8x1xf32>,
    return
  }
  func.func @transform_0(%arg0: i32) -> (i32, i32) {
    %c0_i32 = arith.constant 0 : i32
    %c0_i32_0 = arith.constant 0 : i32
    return %arg0, %c0_i32 : i32, i32
  }
  func.func @transform_1(%arg0: i32) -> (i32, i32) {
    %c0_i32 = arith.constant 0 : i32
    %c0_i32_0 = arith.constant 0 : i32
    return %arg0, %c0_i32 : i32, i32
  }
}

</mosaic_0001>

<llo_original>
// kernel: tpu_custom_call.1
$region0: #{tpu_custom_call.1}
  #allocation0 [shape = 'u32[]', space=smem, size = 0x4, offset = 0x4, fixed_abs, tag = 'smem constant byte address 0x4 - core index']
  #allocation1 [shape = 'u32[72,128]{1,0:T(1,128)}', space=vmem, size = 0x9000, scoped, tag = 'internal scratch']
  %s0 = inlined_call_operand.hbm [shape: f32[8,256], index: 0, kind: input, shape index: {}]
  %s1 = inlined_call_operand.vmem [shape: f32[8,1], index: 1, kind: output, shape index: {}]
  %s2 = sld [smem:[#allocation0]]
  $region18: #{tpu_custom_call.1} parent=0
    _
  %s4 = ssub.s32 1, %s2
  %s5 = scalar_select 0, %s4, %s2
  $region1: #{tpu_custom_call.1} parent=0
    #allocation2 [shape = 'u8[8192]{0}', space=vmem, size = 0x2000, scoped, tag = 'input window, operand 0, single buffered']
    #allocation3 [shape = 's32[1]{0}', space=sflag, size = 0x4, scoped, tag = 'scoped memory for tpu_custom_call.1']
    %6 = vsyncpa [#allocation3], 0
    // Predicated region
    $region2: #{tpu_custom_call.1} parent=1 // pred_check
      _
    $region3: #{tpu_custom_call.1} parent=1 // pred_check_branch
      %8 = sbr.rel (0) target = $region5
    $region4: #{tpu_custom_call.1} parent=1 // pred_region
      %10 = vsyncadd [#allocation3], 0
      %s12 = sshll.u32 %s0, 4
      %s13 = int_to_ptr.hbm [resolvable:$true] %s12
      %s14 = sshll.u32 [#allocation2], 4
      %s15 = int_to_ptr.vmem [resolvable:$true] %s14
      %17 = dma.hbm_to_vmem [thread:$0]  %s13, 256, %s15, [#allocation3]
    $region5: #{tpu_custom_call.1} parent=1 // pred_fallthru
      _
    // Predicated region
    $region6: #{tpu_custom_call.1} parent=1 // pred_check
      _
    $region7: #{tpu_custom_call.1} parent=1 // pred_check_branch
      %19 = sbr.rel (0) target = $region9
    $region8: #{tpu_custom_call.1} parent=1 // pred_region
      %21 = dma.done [#allocation3], 256
    $region9: #{tpu_custom_call.1} parent=1 // pred_fallthru
      _
    %v22 = vld [vmem:[#allocation2] sm:$0xff]
    %v23 = vld [vmem:[#allocation2 + $0x8] sm:$0xff]
    %v24 = vmax.f32 %v22, %v23
    %25 = vmax.xlane.f32.xlu0 %v24
    %v26 = vpop.xlane.xlu0 %25
    %vm27 = vcmask 7168
    %28 = vst.msk [vmem:[%s1] sm:$0xff] %vm27, %v26
    // Predicated region
    $region10: #{tpu_custom_call.1} parent=1 // pred_check
      _
    $region11: #{tpu_custom_call.1} parent=1 // pred_check_branch
      %30 = sbr.rel (0) target = $region13
    $region12: #{tpu_custom_call.1} parent=1 // pred_region
      _
    $region13: #{tpu_custom_call.1} parent=1 // pred_fallthru
      _
    // Predicated region
    $region14: #{tpu_custom_call.1} parent=1 // pred_check
      _
    $region15: #{tpu_custom_call.1} parent=1 // pred_check_branch
      %32 = sbr.rel (0) target = $region17
    $region16: #{tpu_custom_call.1} parent=1 // pred_region
      _
    $region17: #{tpu_custom_call.1} parent=1 // pred_fallthru
      _
    %33 = vsyncpa [#allocation3], 1

</llo_original>
